<compile_context>
chip_gen: v7x
topology: tpu7x:2x2x1
jax: 0.10.0
libtpu: 0.0.40
codegen_flags: <defaults>
</compile_context>

<pallas_src>
import numpy as np
import jax
import jax.numpy as jnp
from jax.experimental import pallas as pl
from jax.experimental.pallas import tpu as pltpu

LANES = 128        # lane width of a vreg
SUB = 8            # sublanes per 32-bit vreg
MIN_TILE_R = 32    # multiple of 32 so int8/bool min-tile (32,128) is satisfied
MAX_TILE_R = 8192  # int32: 2 inputs * 2 buffers * (8192,128)*4B = 16 MiB VMEM
N_SPLIT_MAX = 2    # leading "parallel" grid axis (2 TensorCores on v7x)


def _cdiv(a, b):
    return -(-a // b)


def _round_up(x, m):
    return _cdiv(x, m) * m


def _make_mismatch_kernel(tile_r, steps, rows_arr, needs_mask):
    """Build the per-split mismatch-count kernel.

    pred_ref, true_ref : (tile_r, 128) label tiles (native dtype)
    acc_ref            : (8, 128) int32 accumulator for this split
    """

    def kernel(pred_ref, true_ref, acc_ref):
        @pl.when(pl.program_id(1) == 0)
        def _init():
            acc_ref[...] = jnp.zeros_like(acc_ref)

        # VPU: one compare per element at the native dtype.
        neq = pred_ref[...] != true_ref[...]

        if needs_mask:
            # Rows at or beyond rows_arr are either out-of-bounds garbage from
            # a partial last block or a re-read of the last block (the
            # index_map clamps the block index); zero them out.  The mask uses
            # the *unclamped* block index so duplicated blocks contribute 0.
            row0 = (pl.program_id(0) * steps + pl.program_id(1)) * tile_r
            rows = jax.lax.broadcasted_iota(jnp.int32, (tile_r, 1), 0) + row0
            neq = jnp.logical_and(neq, rows < rows_arr)

        # Pure-VPU sublane-group add-tree: (tile_r,128) -> (8,128), one vadd
        # per input vreg, no XLU / MXU.  Exact int32 accumulation.
        mism = neq.astype(jnp.int32)
        acc_ref[...] += mism.reshape(tile_r // SUB, SUB, LANES).sum(axis=0)

    return kernel


@jax.jit
def hamming_loss_forward(predict_labels, true_labels):
    """Pallas-backed hamming_loss(true, pred) == mean(pred != true)."""
    pred = jnp.asarray(predict_labels)
    true = jnp.asarray(true_labels)
    if pred.shape != true.shape:
        raise ValueError("predict_labels and true_labels must have the same shape")
    if pred.dtype != true.dtype:
        # Compare at a common dtype only if the inputs disagree; otherwise the
        # native (possibly int8/int16) dtype flows straight into the kernel.
        ct = jnp.promote_types(pred.dtype, true.dtype)
        pred = pred.astype(ct)
        true = true.astype(ct)

    n = int(np.prod(pred.shape))
    assert n > 0
    pred = pred.reshape(-1)
    true = true.reshape(-1)

    # Map the flat labels onto (rows, 128) so the last two dims are the native
    # (sublane, lane) tile.  Pick the largest tile (capped at MAX_TILE_R).
    rows_needed = _cdiv(n, LANES)
    tile_r = min(MAX_TILE_R, _round_up(rows_needed, MIN_TILE_R))

    # Only pad when unavoidable (ragged lane count or fewer rows than one
    # tile).  The common big-array case (n % 128 == 0) is a zero-copy reshape.
    rows_arr = rows_needed if rows_needed >= tile_r else tile_r
    pad = rows_arr * LANES - n
    if pad:
        # Same pad value for both arrays -> padded positions never mismatch.
        pred = jnp.pad(pred, (0, pad))
        true = jnp.pad(true, (0, pad))
    pred2 = pred.reshape(rows_arr, LANES)
    true2 = true.reshape(rows_arr, LANES)

    num_blocks = _cdiv(rows_arr, tile_r)
    n_split = min(N_SPLIT_MAX, num_blocks)   # never shrink the tile to split
    steps = _cdiv(num_blocks, n_split)
    # True whenever the rectangular (n_split, steps) grid over-covers the
    # array rows (partial last block and/or duplicated clamped blocks).
    needs_mask = n_split * steps * tile_r > rows_arr
    last_block = num_blocks - 1

    def in_index(p, i):
        # Contiguous blocks per split (each TC streams its own HBM half on
        # v7x).  Clamp so every DMA starts in bounds; the kernel's row mask
        # (built from the unclamped index) zeroes any duplicated block.
        return (jnp.minimum(p * steps + i, last_block), 0)

    in_spec = pl.BlockSpec((tile_r, LANES), in_index)

    counts = pl.pallas_call(
        _make_mismatch_kernel(tile_r, steps, rows_arr, needs_mask),
        out_shape=jax.ShapeDtypeStruct((n_split, SUB, LANES), jnp.int32),
        grid_spec=pltpu.PrefetchScalarGridSpec(
            num_scalar_prefetch=0,
            grid=(n_split, steps),
            in_specs=[in_spec, in_spec],
            out_specs=pl.BlockSpec((None, SUB, LANES), lambda p, i: (p, 0, 0)),
        ),
        compiler_params=pltpu.CompilerParams(
            dimension_semantics=("parallel", "arbitrary"),
            # Big tiles need more than v5e's 16 MiB scoped default; 48 MiB is
            # still well under v7x's 64 MiB physical VMEM per TensorCore.
            vmem_limit_bytes=48 << 20),
    )(pred2, true2)

    # int32 total is exact for n < 2^31 elements.
    total_mismatch = jnp.sum(counts)
    return total_mismatch.astype(jnp.float32) / jnp.float32(n)


def _numpy_reference(pred, true):
    pred = np.asarray(pred).reshape(-1)
    true = np.asarray(true).reshape(-1)
    return float(np.mean(pred != true))


if __name__ == "__main__":
    key = jax.random.PRNGKey(0)
    k1, k2, k3 = jax.random.split(key, 3)
    # Small segmentation-style label maps: batch=2, spatial=16x16, 8 classes.
    true_labels = jax.random.randint(k1, (2, 16, 16), 0, 8, dtype=jnp.int32)
    noise = jax.random.randint(k2, (2, 16, 16), 0, 8, dtype=jnp.int32)
    mask = jax.random.bernoulli(k3, 0.7, (2, 16, 16))
    predict_labels = jnp.where(mask, true_labels, noise)

    out = hamming_loss_forward(predict_labels, true_labels)
    out = jax.block_until_ready(out)

    ref = _numpy_reference(predict_labels, true_labels)
    assert abs(float(out) - ref) < 1e-6, (float(out), ref)
    print("KERNEL_OK")
</pallas_src>

<mosaic_0001>
module attributes {stable_mosaic.version = 11 : i64} {
  func.func @kernel(%arg0: i32, %arg1: i32, %arg2: memref<32x128xi32, #tpu.memory_space<vmem>>, %arg3: memref<32x128xi32, #tpu.memory_space<vmem>>, %arg4: memref<1x8x128xi32, #tpu.memory_space<vmem>>) attributes {dimension_semantics = [#tpu.dimension_semantics<parallel>, #tpu.dimension_semantics<arbitrary>], iteration_bounds = array<i64: 1, 1>, scalar_prefetch = 0 : i64, scratch_operands = 0 : i64, tpu.core_type = #tpu.core_type<tc>, window_params = [{transform_indices = @transform_0, window_bounds = array<i64: 32, 128>}, {transform_indices = @transform_1, window_bounds = array<i64: 32, 128>}, {transform_indices = @transform_2, window_bounds = array<i64: 1, 8, 128>}]} {
    %c0_i32 = arith.constant 0 : i32
    %0 = arith.cmpi eq, %arg1, %c0_i32 : i32
    %1 = arith.extui %0 : i1 to i32
    %c0_i32_0 = arith.constant 0 : i32
    %2 = arith.cmpi ne, %1, %c0_i32_0 : i32
    scf.if %2 {
      %c0_i32_10 = arith.constant 0 : i32
      %15 = vector.broadcast %c0_i32_10 : i32 to vector<8x128xi32>
      %c0_11 = arith.constant 0 : index
      %c0_12 = arith.constant 0 : index
      %c0_13 = arith.constant 0 : index
      %16 = vector.load %arg4[%c0_11, %c0_12, %c0_13] : memref<1x8x128xi32, #tpu.memory_space<vmem>>, vector<1x8x128xi32>
      %17 = vector.shape_cast %16 : vector<1x8x128xi32> to vector<8x128xi32>
      %18 = vector.shape_cast %15 : vector<8x128xi32> to vector<1x8x128xi32>
      tpu.vector_store %arg4[%c0_11, %c0_12, %c0_13], %18 {strides = array<i32>} : memref<1x8x128xi32, #tpu.memory_space<vmem>>, vector<1x8x128xi32>,
    } else {
    }
    %c0 = arith.constant 0 : index
    %c0_1 = arith.constant 0 : index
    %3 = vector.load %arg2[%c0, %c0_1] : memref<32x128xi32, #tpu.memory_space<vmem>>, vector<32x128xi32>
    %c0_2 = arith.constant 0 : index
    %c0_3 = arith.constant 0 : index
    %4 = vector.load %arg3[%c0_2, %c0_3] : memref<32x128xi32, #tpu.memory_space<vmem>>, vector<32x128xi32>
    %5 = arith.cmpi ne, %3, %4 : vector<32x128xi32>
    %6 = arith.extui %5 : vector<32x128xi1> to vector<32x128xi32>
    %c0_4 = arith.constant 0 : index
    %c0_5 = arith.constant 0 : index
    %c0_6 = arith.constant 0 : index
    %7 = vector.load %arg4[%c0_4, %c0_5, %c0_6] : memref<1x8x128xi32, #tpu.memory_space<vmem>>, vector<1x8x128xi32>
    %8 = vector.shape_cast %7 : vector<1x8x128xi32> to vector<8x128xi32>
    %9 = vector.shape_cast %6 : vector<32x128xi32> to vector<4x8x128xi32>
    %cst = arith.constant dense<0> : vector<8x128xi32>
    %10 = vector.multi_reduction <add>, %9, %cst [0] : vector<4x8x128xi32> to vector<8x128xi32>
    %11 = arith.addi %8, %10 : vector<8x128xi32>
    %c0_7 = arith.constant 0 : index
    %c0_8 = arith.constant 0 : index
    %c0_9 = arith.constant 0 : index
    %12 = vector.load %arg4[%c0_7, %c0_8, %c0_9] : memref<1x8x128xi32, #tpu.memory_space<vmem>>, vector<1x8x128xi32>
    %13 = vector.shape_cast %12 : vector<1x8x128xi32> to vector<8x128xi32>
    %14 = vector.shape_cast %11 : vector<8x128xi32> to vector<1x8x128xi32>
    tpu.vector_store %arg4[%c0_7, %c0_8, %c0_9], %14 {strides = array<i32>} : memref<1x8x128xi32, #tpu.memory_space<vmem>>, vector<1x8x128xi32>,
    return
  }
  func.func @transform_0(%arg0: i32, %arg1: i32) -> (i32, i32) {
    %c1_i32 = arith.constant 1 : i32
    %0 = arith.muli %arg0, %c1_i32 : i32
    %1 = arith.addi %0, %arg1 : i32
    %c0_i32 = arith.constant 0 : i32
    %2 = arith.minsi %1, %c0_i32 : i32
    %c0_i32_0 = arith.constant 0 : i32
    %c0_i32_1 = arith.constant 0 : i32
    return %2, %c0_i32_0 : i32, i32
  }
  func.func @transform_1(%arg0: i32, %arg1: i32) -> (i32, i32) {
    %c1_i32 = arith.constant 1 : i32
    %0 = arith.muli %arg0, %c1_i32 : i32
    %1 = arith.addi %0, %arg1 : i32
    %c0_i32 = arith.constant 0 : i32
    %2 = arith.minsi %1, %c0_i32 : i32
    %c0_i32_0 = arith.constant 0 : i32
    %c0_i32_1 = arith.constant 0 : i32
    return %2, %c0_i32_0 : i32, i32
  }
  func.func @transform_2(%arg0: i32, %arg1: i32) -> (i32, i32, i32) {
    %c0_i32 = arith.constant 0 : i32
    %c0_i32_0 = arith.constant 0 : i32
    %c0_i32_1 = arith.constant 0 : i32
    return %arg0, %c0_i32, %c0_i32_0 : i32, i32, i32
  }
}

</mosaic_0001>

<llo_original>
// kernel: hamming_loss_forward.1
$region0: #{hamming_loss_forward.1}
  #allocation0 [shape = 'u32[]', space=smem, size = 0x4, offset = 0x4, fixed_abs, tag = 'smem constant byte address 0x4 - core index']
  #allocation1 [shape = 'u32[144,128]{1,0:T(1,128)}', space=vmem, size = 0x12000, scoped, tag = 'internal scratch']
  %s0 = inlined_call_operand.vmem [shape: s32[32,128], index: 0, kind: input, shape index: {}]
  %s1 = inlined_call_operand.vmem [shape: s32[32,128], index: 1, kind: input, shape index: {}]
  %s2 = inlined_call_operand.vmem [shape: s32[1,8,128], index: 2, kind: output, shape index: {}]
  %s3 = sld [smem:[#allocation0]]
  $region22: #{hamming_loss_forward.1} parent=0
    _
  %s5 = ssub.s32 1, %s3
  %s6 = scalar_select 0, %s5, %s3
  // Predicated region
  $region2: #{hamming_loss_forward.1} parent=0 // pred_check
    _
  $region3: #{hamming_loss_forward.1} parent=0 // pred_check_branch
    %8 = sbr.rel (0) target = $region5
  $region4: #{hamming_loss_forward.1} parent=0 // pred_region
    %s9 = sadd.s32 0, 0
    %p10 = scmp.lt.s32.totalorder %s9, 0
    %s11 = scalar_select %p10, %s9, 0
    %s12 = smul.u32 4, %s11
    %p13 = scmp.lt.s32.totalorder %s12, 3
    %s14 = scalar_select %p13, %s12, 3
    %s15 = smul.addr %s14, 8
    %s16 = scalar_lea.vmem %s0, %s15
    %s17 = sadd.s32 0, 0
    %p18 = scmp.lt.s32.totalorder %s17, 0
    %s19 = scalar_select %p18, %s17, 0
    %s20 = smul.u32 4, %s19
  $region5: #{hamming_loss_forward.1} parent=0 // pred_fallthru
    _
  // Predicated region
  $region6: #{hamming_loss_forward.1} parent=0 // pred_check
    _
  $region7: #{hamming_loss_forward.1} parent=0 // pred_check_branch
    %22 = sbr.rel (0) target = $region9
  $region8: #{hamming_loss_forward.1} parent=0 // pred_region
    %s23 = sadd.s32 0, 0
    %p24 = scmp.lt.s32.totalorder %s23, 0
    %s25 = scalar_select %p24, %s23, 0
    %s26 = smul.u32 4, %s25
    %p27 = scmp.lt.s32.totalorder %s26, 3
    %s28 = scalar_select %p27, %s26, 3
    %s29 = smul.addr %s28, 8
    %s30 = scalar_lea.vmem %s1, %s29
    %s31 = sadd.s32 0, 0
    %p32 = scmp.lt.s32.totalorder %s31, 0
    %s33 = scalar_select %p32, %s31, 0
    %s34 = smul.u32 4, %s33
  $region9: #{hamming_loss_forward.1} parent=0 // pred_fallthru
    _
  %s35 = sadd.s32 0, 0
  %p36 = scmp.lt.s32.totalorder %s35, 0
  %s37 = scalar_select %p36, %s35, 0
  %s38 = smul.u32 4, %s37
  %p39 = scmp.lt.s32.totalorder %s38, 3
  %s40 = scalar_select %p39, %s38, 3
  %s41 = smul.addr %s40, 8
  %s42 = scalar_lea.vmem %s0, %s41
  %s43 = sadd.s32 0, 0
  %p44 = scmp.lt.s32.totalorder %s43, 0
  %s45 = scalar_select %p44, %s43, 0
  %s46 = smul.u32 4, %s45
  %p47 = scmp.lt.s32.totalorder %s46, 3
  %s48 = scalar_select %p47, %s46, 3
  %s49 = smul.addr %s48, 8
  %s50 = scalar_lea.vmem %s1, %s49
  %s51 = sadd.s32 0, 0
  %p52 = scmp.lt.s32.totalorder %s51, 0
  %s53 = scalar_select %p52, %s51, 0
  %s54 = smul.u32 4, %s53
  %p55 = scmp.lt.s32.totalorder %s54, 3
  %s56 = scalar_select %p55, %s54, 3
  %s57 = smul.addr %s56, 8
  %s58 = scalar_lea.vmem %s0, %s57
  %s59 = sadd.s32 0, 0
  %p60 = scmp.lt.s32.totalorder %s59, 0
  %s61 = scalar_select %p60, %s59, 0
  %s62 = smul.u32 4, %s61
  %s63 = sadd.s32 0, 0
  %p64 = scmp.lt.s32.totalorder %s63, 0
  %s65 = scalar_select %p64, %s63, 0
  %s66 = smul.u32 4, %s65
  %p67 = scmp.lt.s32.totalorder %s66, 3
  %s68 = scalar_select %p67, %s66, 3
  %s69 = smul.addr %s68, 8
  %s70 = scalar_lea.vmem %s1, %s69
  %s71 = sadd.s32 0, 0
  %p72 = scmp.lt.s32.totalorder %s71, 0
  %s73 = scalar_select %p72, %s71, 0
  %s74 = smul.u32 4, %s73
  %p75 = scmp.eq.s32.totalorder 0, 0
  // Predicated region
  $region10: #{hamming_loss_forward.1} parent=0 // pred_check
    %p76 = pneg %p75
  $region11: #{hamming_loss_forward.1} parent=0 // pred_check_branch
    %78 = sbr.rel (%p76) target = $region13
  $region12: #{hamming_loss_forward.1} parent=0 // pred_region
    %79 = vst [vmem:[%s2] sm:$0xff] 0
  $region13: #{hamming_loss_forward.1} parent=0 // pred_fallthru
    _
  %v80 = vld [vmem:[%s58] sm:$0xff]
  %v81 = vld [vmem:[%s58 + $0x8] sm:$0xff]
  %v82 = vld [vmem:[%s58 + $0x10] sm:$0xff]
  %v83 = vld [vmem:[%s58 + $0x18] sm:$0xff]
  %v84 = vld [vmem:[%s70] sm:$0xff]
  %v85 = vld [vmem:[%s70 + $0x8] sm:$0xff]
  %v86 = vld [vmem:[%s70 + $0x10] sm:$0xff]
  %v87 = vld [vmem:[%s70 + $0x18] sm:$0xff]
  %vm88 = vcmp.ne.s32.totalorder %v80, %v84
  %vm89 = vcmp.ne.s32.totalorder %v81, %v85
  %vm90 = vcmp.ne.s32.totalorder %v82, %v86
  %vm91 = vcmp.ne.s32.totalorder %v83, %v87
  %v92 = vsel %vm88, 1, 0
  %v93 = vsel %vm89, 1, 0
  %v94 = vsel %vm90, 1, 0
  %v95 = vsel %vm91, 1, 0
  %v96 = vld [vmem:[%s2] sm:$0xff]
  %v97 = vadd.s32 %v92, %v93
  %v98 = vadd.s32 %v94, %v95
  %v99 = vadd.s32 %v97, %v98
  %v100 = vadd.s32 %v96, %v99
  %101 = vst [vmem:[%s2] sm:$0xff] %v100
  // Predicated region
  $region14: #{hamming_loss_forward.1} parent=0 // pred_check
    _
  $region15: #{hamming_loss_forward.1} parent=0 // pred_check_branch
    %103 = sbr.rel (0) target = $region17
  $region16: #{hamming_loss_forward.1} parent=0 // pred_region
    _
  $region17: #{hamming_loss_forward.1} parent=0 // pred_fallthru
    _
  // Predicated region
  $region18: #{hamming_loss_forward.1} parent=0 // pred_check
    _
  $region19: #{hamming_loss_forward.1} parent=0 // pred_check_branch
    %105 = sbr.rel (0) target = $region21
  $region20: #{hamming_loss_forward.1} parent=0 // pred_region
    _
  $region21: #{hamming_loss_forward.1} parent=0 // pred_fallthru
    _

</llo_original>
